<compile_context>
chip_gen: v7x
topology: tpu7x:2x2x1
jax: 0.10.0
libtpu: 0.0.40
codegen_flags: <defaults>
</compile_context>

<pallas_src>
import jax
import jax.numpy as jnp
from jax.experimental import pallas as pl
from jax.experimental.pallas import tpu as pltpu


def residual_block_kernel(x_ref, w1_ref, s1_ref, w2_ref, s2_ref,
                          out_ref, xpad_ref, ypad_ref):
    """Fused: out = relu(conv(relu(conv(x)+s1))+s2 + x), BN scale pre-folded into weights.

    x_ref:   (bn, H, W*C)      lane-fused image block (bn images per grid step)
    w*_ref:  (3, W*C, W*C)     banded block-Toeplitz weights (kw + W folded into lanes)
    s*_ref:  (1, W*C)          per-channel BN shift, pre-tiled over W
    *pad_ref:(bn*(H+2), W*C)   VMEM slab with per-image top/bottom zero halo rows
    """
    bn, H, WC = x_ref.shape
    P = H + 2                 # padded rows per image inside the slab
    M = bn * P - 2            # conv-output rows computed by each tap matmul

    zero_row = jnp.zeros((1, WC), jnp.float32)

    # Stage x into the padded slab; zero only the halo rows (valid rows fully overwritten).
    for n in range(bn):
        base = n * P
        xpad_ref[pl.ds(base, 1), :] = zero_row
        xpad_ref[pl.ds(base + 1, H), :] = x_ref[n]
        xpad_ref[pl.ds(base + H + 1, 1), :] = zero_row
        ypad_ref[pl.ds(base, 1), :] = zero_row
        ypad_ref[pl.ds(base + H + 1, 1), :] = zero_row

    def conv3x3(pad_ref, w_ref):
        # 3 row taps -> 3 lane-dense MXU matmuls over the whole slab, f32 accumulate.
        acc = jnp.dot(pad_ref[pl.ds(0, M), :], w_ref[0],
                      preferred_element_type=jnp.float32)
        for kh in (1, 2):
            acc = acc + jnp.dot(pad_ref[pl.ds(kh, M), :], w_ref[kh],
                                preferred_element_type=jnp.float32)
        return acc            # acc[g] == conv output for slab row g + 1

    # conv1 + BN1 (scale folded into w1) + ReLU; valid rows written back into the y slab
    # (intermediate activation never leaves VMEM).
    acc1 = conv3x3(xpad_ref, w1_ref)
    s1 = s1_ref[...]
    for n in range(bn):
        ypad_ref[pl.ds(n * P + 1, H), :] = jnp.maximum(
            acc1[n * P:n * P + H, :] + s1, 0.0)

    # conv2 + BN2 + residual + ReLU.
    acc2 = conv3x3(ypad_ref, w2_ref)
    s2 = s2_ref[...]
    for n in range(bn):
        out_ref[n] = jnp.maximum(acc2[n * P:n * P + H, :] + s2 + x_ref[n], 0.0)


def _banded_weights(w_hwio, width):
    """(3, 3, Cin, Cout) HWIO -> (3, W*Cin, W*Cout) banded block-Toeplitz matrix.

    M[kh, u*Cin+i, v*Cout+o] = w[kh, u-v+1, i, o] if 0 <= u-v+1 < 3 else 0, so one matmul of a
    (rows, W*Cin) slab against M[kh] performs all kw taps of a SAME 3x3 conv (out-of-range
    horizontal taps fall outside the band -> implicit zero padding).
    """
    kh_, kw_, cin, cout = w_hwio.shape
    u = jnp.arange(width)[:, None, None]
    v = jnp.arange(width)[None, :, None]
    t = jnp.arange(kw_)[None, None, :]
    sel = (u == v + t - (kw_ // 2)).astype(w_hwio.dtype)    # (W, W, 3)
    m = jnp.einsum('uvt,htio->huivo', sel, w_hwio)          # (3, W, Cin, W, Cout)
    return m.reshape(kh_, width * cin, width * cout)


def _pick_block_n(n, cap=8):
    """Largest divisor of n that is <= cap: images fused into one grid step."""
    best = 1
    for d in range(2, min(n, cap) + 1):
        if n % d == 0:
            best = d
    return best


@jax.jit
def residual_block_forward(x_nchw, w1_hwio, shift1, w2_hwio, shift2):
    """w*_hwio already have the BN scale folded along Cout; shift* are per-channel (C,)."""
    x = jnp.transpose(x_nchw, (0, 2, 3, 1)).astype(jnp.float32)   # NCHW -> NHWC
    N, H, W, C = x.shape
    WC = W * C
    x2 = x.reshape(N, H, WC)                                      # lane-fused layout

    w1b = _banded_weights(w1_hwio.astype(jnp.float32), W)         # (3, WC, WC)
    w2b = _banded_weights(w2_hwio.astype(jnp.float32), W)
    s1 = jnp.tile(shift1.astype(jnp.float32), W)[None, :]         # (1, WC)
    s2 = jnp.tile(shift2.astype(jnp.float32), W)[None, :]

    bn = _pick_block_n(N)                                         # images per grid step

    out2 = pl.pallas_call(
        residual_block_kernel,
        out_shape=jax.ShapeDtypeStruct((N, H, WC), jnp.float32),
        grid=(N // bn,),
        in_specs=[
            pl.BlockSpec((bn, H, WC), lambda n: (n, 0, 0)),
            pl.BlockSpec(w1b.shape, lambda n: (0, 0, 0)),
            pl.BlockSpec((1, WC), lambda n: (0, 0)),
            pl.BlockSpec(w2b.shape, lambda n: (0, 0, 0)),
            pl.BlockSpec((1, WC), lambda n: (0, 0)),
        ],
        out_specs=pl.BlockSpec((bn, H, WC), lambda n: (n, 0, 0)),
        scratch_shapes=[
            pltpu.VMEM((bn * (H + 2), WC), jnp.float32),   # padded x slab (halo rows)
            pltpu.VMEM((bn * (H + 2), WC), jnp.float32),   # padded y1 slab (stays on-chip)
        ],
        compiler_params=pltpu.CompilerParams(
            dimension_semantics=("parallel",)),
    )(x2, w1b, s1, w2b, s2)

    return jnp.transpose(out2.reshape(N, H, W, C), (0, 3, 1, 2))  # NHWC -> NCHW


def _reference_nhwc(x, w1, w2, s1, b1, s2, b2):
    dn = jax.lax.conv_dimension_numbers(x.shape, w1.shape, ('NHWC', 'HWIO', 'NHWC'))
    y = jax.lax.conv_general_dilated(x, w1, (1, 1), 'SAME', dimension_numbers=dn,
                                     precision=jax.lax.Precision.HIGHEST)
    y = jnp.maximum(y * s1 + b1, 0.0)
    y = jax.lax.conv_general_dilated(y, w2, (1, 1), 'SAME', dimension_numbers=dn,
                                     precision=jax.lax.Precision.HIGHEST)
    y = y * s2 + b2
    return jnp.maximum(y + x, 0.0)


if __name__ == "__main__":
    N, C, H, W = 2, 4, 16, 16
    key = jax.random.PRNGKey(0)
    kx, kw1, kw2, kg, kb, km, kv = jax.random.split(key, 7)

    # input (PyTorch NCHW convention)
    x_nchw = jax.random.normal(kx, (N, C, H, W), jnp.float32)

    # Conv2d weights, PyTorch OIHW = (numChnl, numChnl, 3, 3), kaiming-uniform-like init
    fan_in = C * 3 * 3
    bound = 1.0 / (fan_in ** 0.5)
    w1_oihw = jax.random.uniform(kw1, (C, C, 3, 3), jnp.float32, -bound, bound)
    w2_oihw = jax.random.uniform(kw2, (C, C, 3, 3), jnp.float32, -bound, bound)
    w1_hwio = jnp.transpose(w1_oihw, (2, 3, 1, 0))
    w2_hwio = jnp.transpose(w2_oihw, (2, 3, 1, 0))

    # BatchNorm2d (eval mode) with non-trivial affine + running stats to exercise the folding.
    eps = 1e-5
    gamma = jax.random.uniform(kg, (C,), jnp.float32, 0.5, 1.5)
    beta = 0.1 * jax.random.normal(kb, (C,), jnp.float32)
    rmean = 0.1 * jax.random.normal(km, (C,), jnp.float32)
    rvar = jax.random.uniform(kv, (C,), jnp.float32, 0.5, 1.5)
    scale = gamma / jnp.sqrt(rvar + eps)
    shift = beta - rmean * scale

    # Fold BN scale into conv weights (wrapper-side algebra; shift stays in the kernel epilogue)
    w1_folded = w1_hwio * scale[None, None, None, :]
    w2_folded = w2_hwio * scale[None, None, None, :]

    out = residual_block_forward(x_nchw, w1_folded, shift, w2_folded, shift)
    out = jax.block_until_ready(out)

    # correctness check vs plain-JAX reference (unfolded weights + explicit BN scale/shift)
    x_nhwc = jnp.transpose(x_nchw, (0, 2, 3, 1))
    ref = _reference_nhwc(x_nhwc, w1_hwio, w2_hwio,
                          scale.reshape(1, 1, 1, C), shift.reshape(1, 1, 1, C),
                          scale.reshape(1, 1, 1, C), shift.reshape(1, 1, 1, C))
    ref = jnp.transpose(ref, (0, 3, 1, 2))

    assert out.shape == (N, C, H, W), out.shape
    max_err = float(jnp.max(jnp.abs(out - ref)))
    assert jnp.allclose(out, ref, atol=2e-4, rtol=2e-4), max_err
    print("KERNEL_OK")
</pallas_src>

<mosaic_0001>
module attributes {stable_mosaic.version = 11 : i64} {
  func.func @residual_block_kernel(%arg0: i32, %arg1: memref<2x16x64xf32, #tpu.memory_space<vmem>>, %arg2: memref<3x64x64xf32, #tpu.memory_space<vmem>>, %arg3: memref<1x64xf32, #tpu.memory_space<vmem>>, %arg4: memref<3x64x64xf32, #tpu.memory_space<vmem>>, %arg5: memref<1x64xf32, #tpu.memory_space<vmem>>, %arg6: memref<2x16x64xf32, #tpu.memory_space<vmem>>, %arg7: memref<36x64xf32, #tpu.memory_space<vmem>>, %arg8: memref<36x64xf32, #tpu.memory_space<vmem>>) attributes {dimension_semantics = [#tpu.dimension_semantics<parallel>], iteration_bounds = array<i64: 1>, scalar_prefetch = 0 : i64, scratch_operands = 2 : i64, tpu.core_type = #tpu.core_type<tc>, window_params = [{transform_indices = @transform_0, window_bounds = array<i64: 2, 16, 64>}, {pipeline_mode = #tpu.pipeline_mode<synchronous>, transform_indices = @transform_1, window_bounds = array<i64: 3, 64, 64>}, {pipeline_mode = #tpu.pipeline_mode<synchronous>, transform_indices = @transform_2, window_bounds = array<i64: 1, 64>}, {pipeline_mode = #tpu.pipeline_mode<synchronous>, transform_indices = @transform_3, window_bounds = array<i64: 3, 64, 64>}, {pipeline_mode = #tpu.pipeline_mode<synchronous>, transform_indices = @transform_4, window_bounds = array<i64: 1, 64>}, {transform_indices = @transform_5, window_bounds = array<i64: 2, 16, 64>}]} {
    %cst = arith.constant 0.000000e+00 : f32
    %0 = vector.broadcast %cst : f32 to vector<1x64xf32>
    %c0 = arith.constant 0 : index
    %c0_0 = arith.constant 0 : index
    %1 = vector.load %arg7[%c0, %c0_0] : memref<36x64xf32, #tpu.memory_space<vmem>>, vector<1x64xf32>
    tpu.vector_store %arg7[%c0, %c0_0], %0 {strides = array<i32>} : memref<36x64xf32, #tpu.memory_space<vmem>>, vector<1x64xf32>,
    %c0_1 = arith.constant 0 : index
    %c0_2 = arith.constant 0 : index
    %c0_3 = arith.constant 0 : index
    %2 = vector.load %arg1[%c0_1, %c0_2, %c0_3] : memref<2x16x64xf32, #tpu.memory_space<vmem>>, vector<1x16x64xf32>
    %3 = vector.shape_cast %2 : vector<1x16x64xf32> to vector<16x64xf32>
    %c1 = arith.constant 1 : index
    %c0_4 = arith.constant 0 : index
    %4 = vector.load %arg7[%c1, %c0_4] : memref<36x64xf32, #tpu.memory_space<vmem>>, vector<16x64xf32>
    tpu.vector_store %arg7[%c1, %c0_4], %3 {strides = array<i32>} : memref<36x64xf32, #tpu.memory_space<vmem>>, vector<16x64xf32>,
    %c17 = arith.constant 17 : index
    %c0_5 = arith.constant 0 : index
    %5 = vector.load %arg7[%c17, %c0_5] : memref<36x64xf32, #tpu.memory_space<vmem>>, vector<1x64xf32>
    tpu.vector_store %arg7[%c17, %c0_5], %0 {strides = array<i32>} : memref<36x64xf32, #tpu.memory_space<vmem>>, vector<1x64xf32>,
    %c0_6 = arith.constant 0 : index
    %c0_7 = arith.constant 0 : index
    %6 = vector.load %arg8[%c0_6, %c0_7] : memref<36x64xf32, #tpu.memory_space<vmem>>, vector<1x64xf32>
    tpu.vector_store %arg8[%c0_6, %c0_7], %0 {strides = array<i32>} : memref<36x64xf32, #tpu.memory_space<vmem>>, vector<1x64xf32>,
    %c17_8 = arith.constant 17 : index
    %c0_9 = arith.constant 0 : index
    %7 = vector.load %arg8[%c17_8, %c0_9] : memref<36x64xf32, #tpu.memory_space<vmem>>, vector<1x64xf32>
    tpu.vector_store %arg8[%c17_8, %c0_9], %0 {strides = array<i32>} : memref<36x64xf32, #tpu.memory_space<vmem>>, vector<1x64xf32>,
    %c18 = arith.constant 18 : index
    %c0_10 = arith.constant 0 : index
    %8 = vector.load %arg7[%c18, %c0_10] : memref<36x64xf32, #tpu.memory_space<vmem>>, vector<1x64xf32>
    tpu.vector_store %arg7[%c18, %c0_10], %0 {strides = array<i32>} : memref<36x64xf32, #tpu.memory_space<vmem>>, vector<1x64xf32>,
    %c1_11 = arith.constant 1 : index
    %c0_12 = arith.constant 0 : index
    %c0_13 = arith.constant 0 : index
    %9 = vector.load %arg1[%c1_11, %c0_12, %c0_13] : memref<2x16x64xf32, #tpu.memory_space<vmem>>, vector<1x16x64xf32>
    %10 = vector.shape_cast %9 : vector<1x16x64xf32> to vector<16x64xf32>
    %c19 = arith.constant 19 : index
    %c0_14 = arith.constant 0 : index
    %11 = vector.load %arg7[%c19, %c0_14] : memref<36x64xf32, #tpu.memory_space<vmem>>, vector<16x64xf32>
    tpu.vector_store %arg7[%c19, %c0_14], %10 {strides = array<i32>} : memref<36x64xf32, #tpu.memory_space<vmem>>, vector<16x64xf32>,
    %c35 = arith.constant 35 : index
    %c0_15 = arith.constant 0 : index
    %12 = vector.load %arg7[%c35, %c0_15] : memref<36x64xf32, #tpu.memory_space<vmem>>, vector<1x64xf32>
    tpu.vector_store %arg7[%c35, %c0_15], %0 {strides = array<i32>} : memref<36x64xf32, #tpu.memory_space<vmem>>, vector<1x64xf32>,
    %c18_16 = arith.constant 18 : index
    %c0_17 = arith.constant 0 : index
    %13 = vector.load %arg8[%c18_16, %c0_17] : memref<36x64xf32, #tpu.memory_space<vmem>>, vector<1x64xf32>
    tpu.vector_store %arg8[%c18_16, %c0_17], %0 {strides = array<i32>} : memref<36x64xf32, #tpu.memory_space<vmem>>, vector<1x64xf32>,
    %c35_18 = arith.constant 35 : index
    %c0_19 = arith.constant 0 : index
    %14 = vector.load %arg8[%c35_18, %c0_19] : memref<36x64xf32, #tpu.memory_space<vmem>>, vector<1x64xf32>
    tpu.vector_store %arg8[%c35_18, %c0_19], %0 {strides = array<i32>} : memref<36x64xf32, #tpu.memory_space<vmem>>, vector<1x64xf32>,
    %c0_20 = arith.constant 0 : index
    %c0_21 = arith.constant 0 : index
    %15 = vector.load %arg7[%c0_20, %c0_21] : memref<36x64xf32, #tpu.memory_space<vmem>>, vector<34x64xf32>
    %c0_22 = arith.constant 0 : index
    %c0_23 = arith.constant 0 : index
    %c0_24 = arith.constant 0 : index
    %16 = vector.load %arg2[%c0_22, %c0_23, %c0_24] : memref<3x64x64xf32, #tpu.memory_space<vmem>>, vector<1x64x64xf32>
    %17 = vector.shape_cast %16 : vector<1x64x64xf32> to vector<64x64xf32>
    %cst_25 = arith.constant dense<0.000000e+00> : vector<34x64xf32>
    %18 = tpu.matmul %15, %17, %cst_25 {dimension_numbers = #tpu.dot_dimension_numbers<[1], [0], [0], [1], [0, 0, 1, 1], [], []>} : vector<34x64xf32>, vector<64x64xf32>, vector<34x64xf32> -> vector<34x64xf32>
    %c1_26 = arith.constant 1 : index
    %c0_27 = arith.constant 0 : index
    %19 = vector.load %arg7[%c1_26, %c0_27] : memref<36x64xf32, #tpu.memory_space<vmem>>, vector<34x64xf32>
    %c1_28 = arith.constant 1 : index
    %c0_29 = arith.constant 0 : index
    %c0_30 = arith.constant 0 : index
    %20 = vector.load %arg2[%c1_28, %c0_29, %c0_30] : memref<3x64x64xf32, #tpu.memory_space<vmem>>, vector<1x64x64xf32>
    %21 = vector.shape_cast %20 : vector<1x64x64xf32> to vector<64x64xf32>
    %cst_31 = arith.constant dense<0.000000e+00> : vector<34x64xf32>
    %22 = tpu.matmul %19, %21, %cst_31 {dimension_numbers = #tpu.dot_dimension_numbers<[1], [0], [0], [1], [0, 0, 1, 1], [], []>} : vector<34x64xf32>, vector<64x64xf32>, vector<34x64xf32> -> vector<34x64xf32>
    %23 = arith.addf %18, %22 : vector<34x64xf32>
    %c2 = arith.constant 2 : index
    %c0_32 = arith.constant 0 : index
    %24 = vector.load %arg7[%c2, %c0_32] : memref<36x64xf32, #tpu.memory_space<vmem>>, vector<34x64xf32>
    %c2_33 = arith.constant 2 : index
    %c0_34 = arith.constant 0 : index
    %c0_35 = arith.constant 0 : index
    %25 = vector.load %arg2[%c2_33, %c0_34, %c0_35] : memref<3x64x64xf32, #tpu.memory_space<vmem>>, vector<1x64x64xf32>
    %26 = vector.shape_cast %25 : vector<1x64x64xf32> to vector<64x64xf32>
    %cst_36 = arith.constant dense<0.000000e+00> : vector<34x64xf32>
    %27 = tpu.matmul %24, %26, %cst_36 {dimension_numbers = #tpu.dot_dimension_numbers<[1], [0], [0], [1], [0, 0, 1, 1], [], []>} : vector<34x64xf32>, vector<64x64xf32>, vector<34x64xf32> -> vector<34x64xf32>
    %28 = arith.addf %23, %27 : vector<34x64xf32>
    %c0_37 = arith.constant 0 : index
    %c0_38 = arith.constant 0 : index
    %29 = vector.load %arg3[%c0_37, %c0_38] : memref<1x64xf32, #tpu.memory_space<vmem>>, vector<1x64xf32>
    %30 = vector.extract_strided_slice %28 {offsets = [0, 0], sizes = [16, 64], strides = [1, 1]} : vector<34x64xf32> to vector<16x64xf32>
    %31 = vector.broadcast %29 : vector<1x64xf32> to vector<16x64xf32>
    %32 = arith.addf %30, %31 : vector<16x64xf32>
    %cst_39 = arith.constant 0.000000e+00 : f32
    %33 = vector.broadcast %cst_39 : f32 to vector<16x64xf32>
    %34 = arith.maximumf %32, %33 : vector<16x64xf32>
    %c1_40 = arith.constant 1 : index
    %c0_41 = arith.constant 0 : index
    %35 = vector.load %arg8[%c1_40, %c0_41] : memref<36x64xf32, #tpu.memory_space<vmem>>, vector<16x64xf32>
    tpu.vector_store %arg8[%c1_40, %c0_41], %34 {strides = array<i32>} : memref<36x64xf32, #tpu.memory_space<vmem>>, vector<16x64xf32>,
    %36 = vector.extract_strided_slice %28 {offsets = [18, 0], sizes = [16, 64], strides = [1, 1]} : vector<34x64xf32> to vector<16x64xf32>
    %37 = vector.broadcast %29 : vector<1x64xf32> to vector<16x64xf32>
    %38 = arith.addf %36, %37 : vector<16x64xf32>
    %cst_42 = arith.constant 0.000000e+00 : f32
    %39 = vector.broadcast %cst_42 : f32 to vector<16x64xf32>
    %40 = arith.maximumf %38, %39 : vector<16x64xf32>
    %c19_43 = arith.constant 19 : index
    %c0_44 = arith.constant 0 : index
    %41 = vector.load %arg8[%c19_43, %c0_44] : memref<36x64xf32, #tpu.memory_space<vmem>>, vector<16x64xf32>
    tpu.vector_store %arg8[%c19_43, %c0_44], %40 {strides = array<i32>} : memref<36x64xf32, #tpu.memory_space<vmem>>, vector<16x64xf32>,
    %c0_45 = arith.constant 0 : index
    %c0_46 = arith.constant 0 : index
    %42 = vector.load %arg8[%c0_45, %c0_46] : memref<36x64xf32, #tpu.memory_space<vmem>>, vector<34x64xf32>
    %c0_47 = arith.constant 0 : index
    %c0_48 = arith.constant 0 : index
    %c0_49 = arith.constant 0 : index
    %43 = vector.load %arg4[%c0_47, %c0_48, %c0_49] : memref<3x64x64xf32, #tpu.memory_space<vmem>>, vector<1x64x64xf32>
    %44 = vector.shape_cast %43 : vector<1x64x64xf32> to vector<64x64xf32>
    %cst_50 = arith.constant dense<0.000000e+00> : vector<34x64xf32>
    %45 = tpu.matmul %42, %44, %cst_50 {dimension_numbers = #tpu.dot_dimension_numbers<[1], [0], [0], [1], [0, 0, 1, 1], [], []>} : vector<34x64xf32>, vector<64x64xf32>, vector<34x64xf32> -> vector<34x64xf32>
    %c1_51 = arith.constant 1 : index
    %c0_52 = arith.constant 0 : index
    %46 = vector.load %arg8[%c1_51, %c0_52] : memref<36x64xf32, #tpu.memory_space<vmem>>, vector<34x64xf32>
    %c1_53 = arith.constant 1 : index
    %c0_54 = arith.constant 0 : index
    %c0_55 = arith.constant 0 : index
    %47 = vector.load %arg4[%c1_53, %c0_54, %c0_55] : memref<3x64x64xf32, #tpu.memory_space<vmem>>, vector<1x64x64xf32>
    %48 = vector.shape_cast %47 : vector<1x64x64xf32> to vector<64x64xf32>
    %cst_56 = arith.constant dense<0.000000e+00> : vector<34x64xf32>
    %49 = tpu.matmul %46, %48, %cst_56 {dimension_numbers = #tpu.dot_dimension_numbers<[1], [0], [0], [1], [0, 0, 1, 1], [], []>} : vector<34x64xf32>, vector<64x64xf32>, vector<34x64xf32> -> vector<34x64xf32>
    %50 = arith.addf %45, %49 : vector<34x64xf32>
    %c2_57 = arith.constant 2 : index
    %c0_58 = arith.constant 0 : index
    %51 = vector.load %arg8[%c2_57, %c0_58] : memref<36x64xf32, #tpu.memory_space<vmem>>, vector<34x64xf32>
    %c2_59 = arith.constant 2 : index
    %c0_60 = arith.constant 0 : index
    %c0_61 = arith.constant 0 : index
    %52 = vector.load %arg4[%c2_59, %c0_60, %c0_61] : memref<3x64x64xf32, #tpu.memory_space<vmem>>, vector<1x64x64xf32>
    %53 = vector.shape_cast %52 : vector<1x64x64xf32> to vector<64x64xf32>
    %cst_62 = arith.constant dense<0.000000e+00> : vector<34x64xf32>
    %54 = tpu.matmul %51, %53, %cst_62 {dimension_numbers = #tpu.dot_dimension_numbers<[1], [0], [0], [1], [0, 0, 1, 1], [], []>} : vector<34x64xf32>, vector<64x64xf32>, vector<34x64xf32> -> vector<34x64xf32>
    %55 = arith.addf %50, %54 : vector<34x64xf32>
    %c0_63 = arith.constant 0 : index
    %c0_64 = arith.constant 0 : index
    %56 = vector.load %arg5[%c0_63, %c0_64] : memref<1x64xf32, #tpu.memory_space<vmem>>, vector<1x64xf32>
    %57 = vector.extract_strided_slice %55 {offsets = [0, 0], sizes = [16, 64], strides = [1, 1]} : vector<34x64xf32> to vector<16x64xf32>
    %58 = vector.broadcast %56 : vector<1x64xf32> to vector<16x64xf32>
    %59 = arith.addf %57, %58 : vector<16x64xf32>
    %c0_65 = arith.constant 0 : index
    %c0_66 = arith.constant 0 : index
    %c0_67 = arith.constant 0 : index
    %60 = vector.load %arg1[%c0_65, %c0_66, %c0_67] : memref<2x16x64xf32, #tpu.memory_space<vmem>>, vector<1x16x64xf32>
    %61 = vector.shape_cast %60 : vector<1x16x64xf32> to vector<16x64xf32>
    %62 = arith.addf %59, %61 : vector<16x64xf32>
    %cst_68 = arith.constant 0.000000e+00 : f32
    %63 = vector.broadcast %cst_68 : f32 to vector<16x64xf32>
    %64 = arith.maximumf %62, %63 : vector<16x64xf32>
    %c0_69 = arith.constant 0 : index
    %c0_70 = arith.constant 0 : index
    %c0_71 = arith.constant 0 : index
    %65 = vector.load %arg6[%c0_69, %c0_70, %c0_71] : memref<2x16x64xf32, #tpu.memory_space<vmem>>, vector<1x16x64xf32>
    %66 = vector.shape_cast %65 : vector<1x16x64xf32> to vector<16x64xf32>
    %67 = vector.shape_cast %64 : vector<16x64xf32> to vector<1x16x64xf32>
    tpu.vector_store %arg6[%c0_69, %c0_70, %c0_71], %67 {strides = array<i32>} : memref<2x16x64xf32, #tpu.memory_space<vmem>>, vector<1x16x64xf32>,
    %68 = vector.extract_strided_slice %55 {offsets = [18, 0], sizes = [16, 64], strides = [1, 1]} : vector<34x64xf32> to vector<16x64xf32>
    %69 = vector.broadcast %56 : vector<1x64xf32> to vector<16x64xf32>
    %70 = arith.addf %68, %69 : vector<16x64xf32>
    %c1_72 = arith.constant 1 : index
    %c0_73 = arith.constant 0 : index
    %c0_74 = arith.constant 0 : index
    %71 = vector.load %arg1[%c1_72, %c0_73, %c0_74] : memref<2x16x64xf32, #tpu.memory_space<vmem>>, vector<1x16x64xf32>
    %72 = vector.shape_cast %71 : vector<1x16x64xf32> to vector<16x64xf32>
    %73 = arith.addf %70, %72 : vector<16x64xf32>
    %cst_75 = arith.constant 0.000000e+00 : f32
    %74 = vector.broadcast %cst_75 : f32 to vector<16x64xf32>
    %75 = arith.maximumf %73, %74 : vector<16x64xf32>
    %c1_76 = arith.constant 1 : index
    %c0_77 = arith.constant 0 : index
    %c0_78 = arith.constant 0 : index
    %76 = vector.load %arg6[%c1_76, %c0_77, %c0_78] : memref<2x16x64xf32, #tpu.memory_space<vmem>>, vector<1x16x64xf32>
    %77 = vector.shape_cast %76 : vector<1x16x64xf32> to vector<16x64xf32>
    %78 = vector.shape_cast %75 : vector<16x64xf32> to vector<1x16x64xf32>
    tpu.vector_store %arg6[%c1_76, %c0_77, %c0_78], %78 {strides = array<i32>} : memref<2x16x64xf32, #tpu.memory_space<vmem>>, vector<1x16x64xf32>,
    return
  }
  func.func @transform_0(%arg0: i32) -> (i32, i32, i32) {
    %c0_i32 = arith.constant 0 : i32
    %c0_i32_0 = arith.constant 0 : i32
    %c0_i32_1 = arith.constant 0 : i32
    return %arg0, %c0_i32, %c0_i32_0 : i32, i32, i32
  }
  func.func @transform_1(%arg0: i32) -> (i32, i32, i32) {
    %c0_i32 = arith.constant 0 : i32
    %c0_i32_0 = arith.constant 0 : i32
    %c0_i32_1 = arith.constant 0 : i32
    %c0_i32_2 = arith.constant 0 : i32
    return %c0_i32, %c0_i32_0, %c0_i32_1 : i32, i32, i32
  }
  func.func @transform_2(%arg0: i32) -> (i32, i32) {
    %c0_i32 = arith.constant 0 : i32
    %c0_i32_0 = arith.constant 0 : i32
    %c0_i32_1 = arith.constant 0 : i32
    return %c0_i32, %c0_i32_0 : i32, i32
  }
  func.func @transform_3(%arg0: i32) -> (i32, i32, i32) {
    %c0_i32 = arith.constant 0 : i32
    %c0_i32_0 = arith.constant 0 : i32
    %c0_i32_1 = arith.constant 0 : i32
    %c0_i32_2 = arith.constant 0 : i32
    return %c0_i32, %c0_i32_0, %c0_i32_1 : i32, i32, i32
  }
  func.func @transform_4(%arg0: i32) -> (i32, i32) {
    %c0_i32 = arith.constant 0 : i32
    %c0_i32_0 = arith.constant 0 : i32
    %c0_i32_1 = arith.constant 0 : i32
    return %c0_i32, %c0_i32_0 : i32, i32
  }
  func.func @transform_5(%arg0: i32) -> (i32, i32, i32) {
    %c0_i32 = arith.constant 0 : i32
    %c0_i32_0 = arith.constant 0 : i32
    %c0_i32_1 = arith.constant 0 : i32
    return %arg0, %c0_i32, %c0_i32_0 : i32, i32, i32
  }
}

</mosaic_0001>

<llo_original>
// kernel: tile.13
$region0: #{tile.13}
  #allocation0 [shape = 's32[1]{0}', space=sflag, size = 0x4, scoped, tag = 'scoped memory for tile.13']
  %s0 = inlined_call_operand.vmem [shape: f32[4], index: 0, kind: input, shape index: {}]
  %s1 = inlined_call_operand.vmem [shape: f32[16,4], index: 1, kind: output, shape index: {}]
  // Predicated region
  $region2: #{tile.13} parent=0 // pred_check
    _
  $region3: #{tile.13} parent=0 // pred_check_branch
    %3 = sbr.rel (0) target = $region5
  $region4: #{tile.13} parent=0 // pred_region
    _
  $region5: #{tile.13} parent=0 // pred_fallthru
    _
  %v4 = vld [vmem:[%s0] ss:$0 sm:$0xff]
  %5 = vst [vmem:[%s1] sm:$0xff] %v4
  %s6 = scalar_lea.vmem %s1, 8
  %7 = vst [vmem:[%s6] sm:$0xff] %v4

// kernel: tile.14
$region0: #{tile.14}
  %s0 = inlined_call_operand.vmem [shape: f32[16,4], index: 0, kind: input, shape index: {}]
  %s1 = inlined_call_operand.vmem [shape: f32[1,64], index: 1, kind: output, shape index: {}]
  $region1: #{tile.14} parent=0
    #allocation0 [shape = 'u8[4096]{0}', space=vmem, size = 0x1000, scoped, tag = 'scoped mem for output reshape']
    %v2 = vld [vmem:[%s0] sm:$0x1]
    %vm3 = vcmask 31744
    %4 = vst.msk [vmem:[#allocation0] sm:$0x1] %vm3, %v2
    %s5 = scalar_lea.vmem %s0, 15
    %v6 = vld [vmem:[%s5] sm:$0x1]
    %7 = vrot.lane.b32.xlu0 %v6, 60
    %v8 = vpop.permute.xlu0 %7
    %vm9 = vcmask 523744
    %10 = vst.msk [vmem:[#allocation0] sm:$0x1] %vm9, %v8
    %s11 = scalar_lea.vmem %s0, 14
    %v12 = vld [vmem:[%s11] sm:$0x1]
    %13 = vrot.lane.b32.xlu0 %v12, 56
    %v14 = vpop.permute.xlu0 %13
    %vm15 = vcmask 490944
    %16 = vst.msk [vmem:[#allocation0] sm:$0x1] %vm15, %v14
    %s17 = scalar_lea.vmem %s0, 13
    %v18 = vld [vmem:[%s17] sm:$0x1]
    %19 = vrot.lane.b32.xlu0 %v18, 52
    %v20 = vpop.permute.xlu0 %19
    %vm21 = vcmask 458144
    %22 = vst.msk [vmem:[#allocation0] sm:$0x1] %vm21, %v20
    %s23 = scalar_lea.vmem %s0, 12
    %v24 = vld [vmem:[%s23] sm:$0x1]
    %25 = vrot.lane.b32.xlu0 %v24, 48
    %v26 = vpop.permute.xlu0 %25
    %vm27 = vcmask 425344
    %28 = vst.msk [vmem:[#allocation0] sm:$0x1] %vm27, %v26
    %s29 = scalar_lea.vmem %s0, 11
    %v30 = vld [vmem:[%s29] sm:$0x1]
    %31 = vrot.lane.b32.xlu0 %v30, 44
    %v32 = vpop.permute.xlu0 %31
    %vm33 = vcmask 392544
    %34 = vst.msk [vmem:[#allocation0] sm:$0x1] %vm33, %v32
    %s35 = scalar_lea.vmem %s0, 10
    %v36 = vld [vmem:[%s35] sm:$0x1]
    %37 = vrot.lane.b32.xlu0 %v36, 40
    %v38 = vpop.permute.xlu0 %37
    %vm39 = vcmask 359744
    %40 = vst.msk [vmem:[#allocation0] sm:$0x1] %vm39, %v38
    %s41 = scalar_lea.vmem %s0, 9
    %v42 = vld [vmem:[%s41] sm:$0x1]
    %43 = vrot.lane.b32.xlu0 %v42, 36
    %v44 = vpop.permute.xlu0 %43
    %vm45 = vcmask 326944
    %46 = vst.msk [vmem:[#allocation0] sm:$0x1] %vm45, %v44
    %s47 = scalar_lea.vmem %s0, 8
    %v48 = vld [vmem:[%s47] sm:$0x1]
    %49 = vrot.lane.b32.xlu0 %v48, 32
    %v50 = vpop.permute.xlu0 %49
    %vm51 = vcmask 294144
    %52 = vst.msk [vmem:[#allocation0] sm:$0x1] %vm51, %v50
    %s53 = scalar_lea.vmem %s0, 7
    %v54 = vld [vmem:[%s53] sm:$0x1]
    %55 = vrot.lane.b32.xlu0 %v54, 28
    %v56 = vpop.permute.xlu0 %55
    %vm57 = vcmask 261344
    %58 = vst.msk [vmem:[#allocation0] sm:$0x1] %vm57, %v56
    %s59 = scalar_lea.vmem %s0, 6
    %v60 = vld [vmem:[%s59] sm:$0x1]
    %61 = vrot.lane.b32.xlu0 %v60, 24
    %v62 = vpop.permute.xlu0 %61
    %vm63 = vcmask 228544
    %64 = vst.msk [vmem:[#allocation0] sm:$0x1] %vm63, %v62
    %s65 = scalar_lea.vmem %s0, 5
    %v66 = vld [vmem:[%s65] sm:$0x1]
    %67 = vrot.lane.b32.xlu0 %v66, 20
    %v68 = vpop.permute.xlu0 %67
    %vm69 = vcmask 195744
    %70 = vst.msk [vmem:[#allocation0] sm:$0x1] %vm69, %v68
    %s71 = scalar_lea.vmem %s0, 4
    %v72 = vld [vmem:[%s71] sm:$0x1]
    %73 = vrot.lane.b32.xlu0 %v72, 16
    %v74 = vpop.permute.xlu0 %73
    %vm75 = vcmask 162944
    %76 = vst.msk [vmem:[#allocation0] sm:$0x1] %vm75, %v74
    %s77 = scalar_lea.vmem %s0, 3
    %v78 = vld [vmem:[%s77] sm:$0x1]
    %79 = vrot.lane.b32.xlu0 %v78, 12
    %v80 = vpop.permute.xlu0 %79
    %vm81 = vcmask 130144
    %82 = vst.msk [vmem:[#allocation0] sm:$0x1] %vm81, %v80
    %s83 = scalar_lea.vmem %s0, 2
    %v84 = vld [vmem:[%s83] sm:$0x1]
    %85 = vrot.lane.b32.xlu0 %v84, 8
    %v86 = vpop.permute.xlu0 %85
    %vm87 = vcmask 97344
    %88 = vst.msk [vmem:[#allocation0] sm:$0x1] %vm87, %v86
    %s89 = scalar_lea.vmem %s0, 1
    %v90 = vld [vmem:[%s89] sm:$0x1]
    %91 = vrot.lane.b32.xlu0 %v90, 4
    %v92 = vpop.permute.xlu0 %91
    %vm93 = vcmask 64544
    %94 = vst.msk [vmem:[#allocation0] sm:$0x1] %vm93, %v92
    %s96 = sshllo.u32 0, 1
    %v98 = vld [vmem:[#allocation0] sm:%s96]
    %s99 = sshllo.u32 0, 1
    %100 = vst [vmem:[%s1] sm:%s99] %v98

// kernel: residual_block_forward.1
$region0: #{residual_block_forward.1}
  #allocation0 [shape = 'u32[]', space=smem, size = 0x4, offset = 0x4, fixed_abs, tag = 'smem constant byte address 0x4 - core index']
  #allocation1 [shape = 'u32[144,128]{1,0:T(1,128)}', space=vmem, size = 0x12000, scoped, tag = 'internal scratch']
  #allocation2 [shape = 'f32[36,64]{1,0:T(8,128)}', space=vmem, size = 0x5000, scoped, tag = 'scratch operand']
  #allocation3 [shape = 'f32[36,64]{1,0:T(8,128)}', space=vmem, size = 0x5000, scoped, tag = 'scratch operand']
  %s0 = inlined_call_operand.vmem [shape: f32[2,16,64], index: 0, kind: input, shape index: {}]
  %s1 = inlined_call_operand.vmem [shape: f32[3,64,64], index: 1, kind: input, shape index: {}]
  %s2 = inlined_call_operand.vmem [shape: f32[1,64], index: 2, kind: input, shape index: {}]
  %s3 = inlined_call_operand.vmem [shape: f32[3,64,64], index: 3, kind: input, shape index: {}]
  %s4 = inlined_call_operand.vmem [shape: f32[1,64], index: 4, kind: input, shape index: {}]
  %s5 = inlined_call_operand.vmem [shape: f32[2,16,64], index: 5, kind: output, shape index: {}]
  %s6 = sld [smem:[#allocation0]]
  $region30: #{residual_block_forward.1} parent=0
    _
  %s8 = ssub.s32 1, %s6
  %s9 = scalar_select 0, %s8, %s6
  // Predicated region
  $region2: #{residual_block_forward.1} parent=0 // pred_check
    _
  $region3: #{residual_block_forward.1} parent=0 // pred_check_branch
    %11 = sbr.rel (0) target = $region5
  $region4: #{residual_block_forward.1} parent=0 // pred_region
    _
  $region5: #{residual_block_forward.1} parent=0 // pred_fallthru
    _
  // Predicated region
  $region6: #{residual_block_forward.1} parent=0 // pred_check
    _
  $region7: #{residual_block_forward.1} parent=0 // pred_check_branch
    %13 = sbr.rel (0) target = $region9
  $region8: #{residual_block_forward.1} parent=0 // pred_region
    _
  $region9: #{residual_block_forward.1} parent=0 // pred_fallthru
    _
  // Predicated region
  $region10: #{residual_block_forward.1} parent=0 // pred_check
    _
  $region11: #{residual_block_forward.1} parent=0 // pred_check_branch
    %15 = sbr.rel (0) target = $region13
  $region12: #{residual_block_forward.1} parent=0 // pred_region
    _
  $region13: #{residual_block_forward.1} parent=0 // pred_fallthru
    _
  // Predicated region
  $region14: #{residual_block_forward.1} parent=0 // pred_check
    _
  $region15: #{residual_block_forward.1} parent=0 // pred_check_branch
    %17 = sbr.rel (0) target = $region17
  $region16: #{residual_block_forward.1} parent=0 // pred_region
    _
  $region17: #{residual_block_forward.1} parent=0 // pred_fallthru
    _
  // Predicated region
  $region18: #{residual_block_forward.1} parent=0 // pred_check
    _
  $region19: #{residual_block_forward.1} parent=0 // pred_check_branch
    %19 = sbr.rel (0) target = $region21
  $region20: #{residual_block_forward.1} parent=0 // pred_region
    _
  $region21: #{residual_block_forward.1} parent=0 // pred_fallthru
    _
  %vm20 = vcmask 516096
  %21 = vst.msk [vmem:[#allocation2] sm:$0x1] %vm20, 0.0
  %v22 = vld [vmem:[%s0] sm:$0xff]
  %v23 = vld [vmem:[%s0 + $0x8] sm:$0xff]
  %vm24 = vcmask 523264
  %25 = vst.msk [vmem:[#allocation2 + $0x1] sm:$0xff] %vm24, %v22
  %26 = vst.msk [vmem:[#allocation2 + $0x9] sm:$0xff] %vm24, %v23
  %27 = vst.msk [vmem:[#allocation2 + $0x11] sm:$0x1] %vm20, 0.0
  %28 = vst.msk [vmem:[#allocation3] sm:$0x1] %vm20, 0.0
  %29 = vst.msk [vmem:[#allocation3 + $0x11] sm:$0x1] %vm20, 0.0
  %30 = vst.msk [vmem:[#allocation2 + $0x12] sm:$0x1] %vm20, 0.0
  %s31 = scalar_lea.vmem %s0, 16
  %v32 = vld [vmem:[%s31] sm:$0xff]
  %v33 = vld [vmem:[%s31 + $0x8] sm:$0xff]
  %34 = vst.msk [vmem:[#allocation2 + $0x13] sm:$0xff] %vm24, %v32
  %35 = vst.msk [vmem:[#allocation2 + $0x1b] sm:$0xff] %vm24, %v33
  %36 = vst.msk [vmem:[#allocation2 + $0x23] sm:$0x1] %vm20, 0.0
  %37 = vst.msk [vmem:[#allocation3 + $0x12] sm:$0x1] %vm20, 0.0
  %38 = vst.msk [vmem:[#allocation3 + $0x23] sm:$0x1] %vm20, 0.0
  %v39 = vld [vmem:[#allocation2] sm:$0xff]
  %v40 = vld [vmem:[#allocation2 + $0x8] sm:$0xff]
  %v41 = vld [vmem:[#allocation2 + $0x10] sm:$0xff]
  %v42 = vld [vmem:[#allocation2 + $0x18] sm:$0xff]
  %v43 = vld [vmem:[#allocation2 + $0x20] sm:$0x3]
  %v44 = vld [vmem:[%s1] sm:$0xff]
  %v45 = vld [vmem:[%s1 + $0x8] sm:$0xff]
  %v46 = vld [vmem:[%s1 + $0x10] sm:$0xff]
  %v47 = vld [vmem:[%s1 + $0x18] sm:$0xff]
  %v48 = vld [vmem:[%s1 + $0x20] sm:$0xff]
  %v49 = vld [vmem:[%s1 + $0x28] sm:$0xff]
  %v50 = vld [vmem:[%s1 + $0x30] sm:$0xff]
  %v51 = vld [vmem:[%s1 + $0x38] sm:$0xff]
  %v52 = vld [vmem:[#allocation2 + $0x1] sm:$0xff]
  %v53 = vld [vmem:[#allocation2 + $0x9] sm:$0xff]
  %v54 = vld [vmem:[#allocation2 + $0x11] sm:$0xff]
  %v55 = vld [vmem:[#allocation2 + $0x19] sm:$0xff]
  %v56 = vld [vmem:[#allocation2 + $0x21] sm:$0x3]
  %s57 = scalar_lea.vmem %s1, 64
  %v58 = vld [vmem:[%s57] sm:$0xff]
  %v59 = vld [vmem:[%s57 + $0x8] sm:$0xff]
  %v60 = vld [vmem:[%s57 + $0x10] sm:$0xff]
  %v61 = vld [vmem:[%s57 + $0x18] sm:$0xff]
  %v62 = vld [vmem:[%s57 + $0x20] sm:$0xff]
  %v63 = vld [vmem:[%s57 + $0x28] sm:$0xff]
  %v64 = vld [vmem:[%s57 + $0x30] sm:$0xff]
  %v65 = vld [vmem:[%s57 + $0x38] sm:$0xff]
  %v67 = vsel %vm24, %v52, 0
  %v70 = vsel %vm24, %v53, 0
  %v73 = vsel %vm24, %v54, 0
  %v76 = vsel %vm24, %v55, 0
  %v79 = vsel %vm24, %v56, 0
  %81 = vmatprep.subr.mxu0 0.0
  %82 = vmatpush1.msra.mxu0 %v58
  %83 = vmatprep.subr.mxu0 0.0
  %84 = vmatpush1.msra.mxu0 %v59
  %85 = vmatprep.subr.mxu0 0.0
  %86 = vmatpush1.msra.mxu0 %v60
  %87 = vmatprep.subr.mxu0 0.0
  %88 = vmatpush1.msra.mxu0 %v61
  %89 = vmatprep.subr.mxu0 0.0
  %90 = vmatpush1.msra.mxu0 %v62
  %91 = vmatprep.subr.mxu0 0.0
  %92 = vmatpush1.msra.mxu0 %v63
  %93 = vmatprep.subr.mxu0 0.0
  %94 = vmatpush1.msra.mxu0 %v64
  %95 = vmatprep.subr.mxu0 0.0
  %96 = vmatpush1.msra.mxu0 %v65
  %97 = vmatprep.subr.mxu0 0.0
  %98 = vmatpush1.msra.mxu0 0.0
  %99 = vmatprep.subr.mxu0 0.0
  %100 = vmatpush1.msra.mxu0 0.0
  %101 = vmatprep.subr.mxu0 0.0
  %102 = vmatpush1.msra.mxu0 0.0
  %103 = vmatprep.subr.mxu0 0.0
  %104 = vmatpush1.msra.mxu0 0.0
  %105 = vmatprep.subr.mxu0 0.0
  %106 = vmatpush1.msra.mxu0 0.0
  %107 = vmatprep.subr.mxu0 0.0
  %108 = vmatpush1.msra.mxu0 0.0
  %109 = vmatprep.subr.mxu0 0.0
  %110 = vmatpush1.msra.mxu0 0.0
  %111 = vmatprep.subr.mxu0 0.0
  %112 = vmatpush1.msra.mxu0 0.0
  %113 = vmatprep.subr.mxu0 0.0
  %114 = vmatpush1.msra.mxu0 0.0
  %115 = vmatprep.subr.mxu0 0.0
  %116 = vmatpush1.msra.mxu0 0.0
  %117 = vmatprep.subr.mxu0 0.0
  %118 = vmatpush1.msra.mxu0 0.0
  %119 = vmatprep.subr.mxu0 0.0
  %120 = vmatpush1.msra.mxu0 0.0
  %121 = vmatprep.subr.mxu0 0.0
  %122 = vmatpush1.msra.mxu0 0.0
  %123 = vmatprep.subr.mxu0 0.0
  %124 = vmatpush1.msra.mxu0 0.0
  %125 = vmatprep.subr.mxu0 0.0
  %126 = vmatpush1.msra.mxu0 0.0
  %127 = vmatprep.subr.mxu0 0.0
  %128 = vmatpush1.msra.mxu0 0.0
  %129 = vmatprep.subr.mxu0 0.0
  %130 = vmatpush1.msra.mxu0 0.0
  %131 = vmatprep.subr.mxu0 0.0
  %132 = vmatpush1.msra.mxu0 0.0
  %133 = vmatprep.subr.mxu0 0.0
  %134 = vmatpush1.msra.mxu0 0.0
  %135 = vmatprep.subr.mxu0 0.0
  %136 = vmatpush1.msra.mxu0 0.0
  %137 = vmatprep.subr.mxu0 0.0
  %138 = vmatpush1.msra.mxu0 0.0
  %139 = vmatprep.subr.mxu0 0.0
  %140 = vmatpush1.msra.mxu0 0.0
  %141 = vmatprep.subr.mxu0 0.0
  %142 = vmatpush1.msra.mxu0 0.0
  %143 = vmatprep.subr.mxu0 0.0
  %144 = vmatpush1.msra.mxu0 0.0
  %145 = vmatprep.mubr.f32.mxu0 0.0
  %146 = vmatmul.mubr.f32.gmra.mrb[0].mxu0 %v67
  %v147 = vpop.f32.mrb[0].mxu0
  %v148 = vadd.f32 0.0, %v147
  %v149 = vpop.f32.mrb[0].mxu0
  %150 = vmatprep.mubr.f32.mxu0 0.0
  %151 = vmatmul.mubr.f32.gmra.mrb[0].mxu0 %v70
  %v152 = vpop.f32.mrb[0].mxu0
  %v153 = vadd.f32 0.0, %v152
  %v154 = vpop.f32.mrb[0].mxu0
  %155 = vmatprep.mubr.f32.mxu0 0.0
  %156 = vmatmul.mubr.f32.gmra.mrb[0].mxu0 %v73
  %v157 = vpop.f32.mrb[0].mxu0
  %v158 = vadd.f32 0.0, %v157
  %v159 = vpop.f32.mrb[0].mxu0
  %160 = vmatprep.mubr.f32.mxu0 0.0
  %161 = vmatmul.mubr.f32.gmra.mrb[0].mxu0 %v76
  %v162 = vpop.f32.mrb[0].mxu0
  %v163 = vadd.f32 0.0, %v162
  %v164 = vpop.f32.mrb[0].mxu0
  %165 = vmatprep.mubr.f32.mxu0 0.0
  %166 = vmatmul.mubr.f32.gmra.mrb[0].mxu0 %v79
  %v167 = vpop.f32.mrb[0].mxu0
  %v168 = vadd.f32 0.0, %v167
  %v169 = vpop.f32.mrb[0].mxu0
  %170 = vdwg.mxu0
  %v172 = vsel %vm24, %v39, 0
  %v175 = vsel %vm24, %v40, 0
  %v178 = vsel %vm24, %v41, 0
  %v181 = vsel %vm24, %v42, 0
  %v184 = vsel %vm24, %v43, 0
  %186 = vmatprep.subr.mxu0 0.0
  %187 = vmatpush1.msra.mxu0 %v44
  %188 = vmatprep.subr.mxu0 0.0
  %189 = vmatpush1.msra.mxu0 %v45
  %190 = vmatprep.subr.mxu0 0.0
  %191 = vmatpush1.msra.mxu0 %v46
  %192 = vmatprep.subr.mxu0 0.0
  %193 = vmatpush1.msra.mxu0 %v47
  %194 = vmatprep.subr.mxu0 0.0
  %195 = vmatpush1.msra.mxu0 %v48
  %196 = vmatprep.subr.mxu0 0.0
  %197 = vmatpush1.msra.mxu0 %v49
  %198 = vmatprep.subr.mxu0 0.0
  %199 = vmatpush1.msra.mxu0 %v50
  %200 = vmatprep.subr.mxu0 0.0
  %201 = vmatpush1.msra.mxu0 %v51
  %202 = vmatprep.subr.mxu0 0.0
  %203 = vmatpush1.msra.mxu0 0.0
  %204 = vmatprep.subr.mxu0 0.0
  %205 = vmatpush1.msra.mxu0 0.0
  %206 = vmatprep.subr.mxu0 0.0
  %207 = vmatpush1.msra.mxu0 0.0
  %208 = vmatprep.subr.mxu0 0.0
  %209 = vmatpush1.msra.mxu0 0.0
  %210 = vmatprep.subr.mxu0 0.0
  %211 = vmatpush1.msra.mxu0 0.0
  %212 = vmatprep.subr.mxu0 0.0
  %213 = vmatpush1.msra.mxu0 0.0
  %214 = vmatprep.subr.mxu0 0.0
  %215 = vmatpush1.msra.mxu0 0.0
  %216 = vmatprep.subr.mxu0 0.0
  %217 = vmatpush1.msra.mxu0 0.0
  %218 = vmatprep.subr.mxu0 0.0
  %219 = vmatpush1.msra.mxu0 0.0
  %220 = vmatprep.subr.mxu0 0.0
  %221 = vmatpush1.msra.mxu0 0.0
  %222 = vmatprep.subr.mxu0 0.0
  %223 = vmatpush1.msra.mxu0 0.0
  %224 = vmatprep.subr.mxu0 0.0
  %225 = vmatpush1.msra.mxu0 0.0
  %226 = vmatprep.subr.mxu0 0.0
  %227 = vmatpush1.msra.mxu0 0.0
  %228 = vmatprep.subr.mxu0 0.0
  %229 = vmatpush1.msra.mxu0 0.0
  %230 = vmatprep.subr.mxu0 0.0
  %231 = vmatpush1.msra.mxu0 0.0
  %232 = vmatprep.subr.mxu0 0.0
  %233 = vmatpush1.msra.mxu0 0.0
  %234 = vmatprep.subr.mxu0 0.0
  %235 = vmatpush1.msra.mxu0 0.0
  %236 = vmatprep.subr.mxu0 0.0
  %237 = vmatpush1.msra.mxu0 0.0
  %238 = vmatprep.subr.mxu0 0.0
  %239 = vmatpush1.msra.mxu0 0.0
  %240 = vmatprep.subr.mxu0 0.0
  %241 = vmatpush1.msra.mxu0 0.0
  %242 = vmatprep.subr.mxu0 0.0
  %243 = vmatpush1.msra.mxu0 0.0
  %244 = vmatprep.subr.mxu0 0.0
  %245 = vmatpush1.msra.mxu0 0.0
  %246 = vmatprep.subr.mxu0 0.0
  %247 = vmatpush1.msra.mxu0 0.0
  %248 = vmatprep.subr.mxu0 0.0
  %249 = vmatpush1.msra.mxu0 0.0
  %250 = vmatprep.mubr.f32.mxu0 0.0
  %251 = vmatmul.mubr.f32.gmra.mrb[0].mxu0 %v172
  %v252 = vpop.f32.mrb[0].mxu0
  %v253 = vadd.f32 %v148, %v252
  %v254 = vpop.f32.mrb[0].mxu0
  %255 = vmatprep.mubr.f32.mxu0 0.0
  %256 = vmatmul.mubr.f32.gmra.mrb[0].mxu0 %v175
  %v257 = vpop.f32.mrb[0].mxu0
  %v258 = vadd.f32 %v153, %v257
  %v259 = vpop.f32.mrb[0].mxu0
  %260 = vmatprep.mubr.f32.mxu0 0.0
  %261 = vmatmul.mubr.f32.gmra.mrb[0].mxu0 %v178
  %v262 = vpop.f32.mrb[0].mxu0
  %v263 = vadd.f32 %v158, %v262
  %v264 = vpop.f32.mrb[0].mxu0
  %265 = vmatprep.mubr.f32.mxu0 0.0
  %266 = vmatmul.mubr.f32.gmra.mrb[0].mxu0 %v181
  %v267 = vpop.f32.mrb[0].mxu0
  %v268 = vadd.f32 %v163, %v267
  %v269 = vpop.f32.mrb[0].mxu0
  %270 = vmatprep.mubr.f32.mxu0 0.0
  %271 = vmatmul.mubr.f32.gmra.mrb[0].mxu0 %v184
  %v272 = vpop.f32.mrb[0].mxu0
  %v273 = vadd.f32 %v168, %v272
  %v274 = vpop.f32.mrb[0].mxu0
  %275 = vdwg.mxu0
  %v276 = vld [vmem:[#allocation2 + $0x2] sm:$0xff]
  %v277 = vld [vmem:[#allocation2 + $0xa] sm:$0xff]
  %v278 = vld [vmem:[#allocation2 + $0x12] sm:$0xff]
  %v279 = vld [vmem:[#allocation2 + $0x1a] sm:$0xff]
  %v280 = vld [vmem:[#allocation2 + $0x22] sm:$0x3]
  %s281 = scalar_lea.vmem %s1, 128
  %v282 = vld [vmem:[%s281] sm:$0xff]
  %v283 = vld [vmem:[%s281 + $0x8] sm:$0xff]
  %v284 = vld [vmem:[%s281 + $0x10] sm:$0xff]
  %v285 = vld [vmem:[%s281 + $0x18] sm:$0xff]
  %v286 = vld [vmem:[%s281 + $0x20] sm:$0xff]
  %v287 = vld [vmem:[%s281 + $0x28] sm:$0xff]
  %v288 = vld [vmem:[%s281 + $0x30] sm:$0xff]
  %v289 = vld [vmem:[%s281 + $0x38] sm:$0xff]
  %v291 = vsel %vm24, %v276, 0
  %v294 = vsel %vm24, %v277, 0
  %v297 = vsel %vm24, %v278, 0
  %v300 = vsel %vm24, %v279, 0
  %v303 = vsel %vm24, %v280, 0
  %305 = vmatprep.subr.mxu0 0.0
  %306 = vmatpush1.msra.mxu0 %v282
  %307 = vmatprep.subr.mxu0 0.0
  %308 = vmatpush1.msra.mxu0 %v283
  %309 = vmatprep.subr.mxu0 0.0
  %310 = vmatpush1.msra.mxu0 %v284
  %311 = vmatprep.subr.mxu0 0.0
  %312 = vmatpush1.msra.mxu0 %v285
  %313 = vmatprep.subr.mxu0 0.0
  %314 = vmatpush1.msra.mxu0 %v286
  %315 = vmatprep.subr.mxu0 0.0
  %316 = vmatpush1.msra.mxu0 %v287
  %317 = vmatprep.subr.mxu0 0.0
  %318 = vmatpush1.msra.mxu0 %v288
  %319 = vmatprep.subr.mxu0 0.0
  %320 = vmatpush1.msra.mxu0 %v289
  %321 = vmatprep.subr.mxu0 0.0
  %322 = vmatpush1.msra.mxu0 0.0
  %323 = vmatprep.subr.mxu0 0.0
  %324 = vmatpush1.msra.mxu0 0.0
  %325 = vmatprep.subr.mxu0 0.0
  %326 = vmatpush1.msra.mxu0 0.0
  %327 = vmatprep.subr.mxu0 0.0
  %328 = vmatpush1.msra.mxu0 0.0
  %329 = vmatprep.subr.mxu0 0.0
  %330 = vmatpush1.msra.mxu0 0.0
  %331 = vmatprep.subr.mxu0 0.0
  %332 = vmatpush1.msra.mxu0 0.0
  %333 = vmatprep.subr.mxu0 0.0
  %334 = vmatpush1.msra.mxu0 0.0
  %335 = vmatprep.subr.mxu0 0.0
  %336 = vmatpush1.msra.mxu0 0.0
  %337 = vmatprep.subr.mxu0 0.0
  %338 = vmatpush1.msra.mxu0 0.0
  %339 = vmatprep.subr.mxu0 0.0
  %340 = vmatpush1.msra.mxu0 0.0
  %341 = vmatprep.subr.mxu0 0.0
  %342 = vmatpush1.msra.mxu0 0.0
  %343 = vmatprep.subr.mxu0 0.0
  %344 = vmatpush1.msra.mxu0 0.0
  %345 = vmatprep.subr.mxu0 0.0
  %346 = vmatpush1.msra.mxu0 0.0
  %347 = vmatprep.subr.mxu0 0.0
  %348 = vmatpush1.msra.mxu0 0.0
  %349 = vmatprep.subr.mxu0 0.0
  %350 = vmatpush1.msra.mxu0 0.0
  %351 = vmatprep.subr.mxu0 0.0
  %352 = vmatpush1.msra.mxu0 0.0
  %353 = vmatprep.subr.mxu0 0.0
  %354 = vmatpush1.msra.mxu0 0.0
  %355 = vmatprep.subr.mxu0 0.0
  %356 = vmatpush1.msra.mxu0 0.0
  %357 = vmatprep.subr.mxu0 0.0
  %358 = vmatpush1.msra.mxu0 0.0
  %359 = vmatprep.subr.mxu0 0.0
  %360 = vmatpush1.msra.mxu0 0.0
  %361 = vmatprep.subr.mxu0 0.0
  %362 = vmatpush1.msra.mxu0 0.0
  %363 = vmatprep.subr.mxu0 0.0
  %364 = vmatpush1.msra.mxu0 0.0
  %365 = vmatprep.subr.mxu0 0.0
  %366 = vmatpush1.msra.mxu0 0.0
  %367 = vmatprep.subr.mxu0 0.0
  %368 = vmatpush1.msra.mxu0 0.0
  %369 = vmatprep.mubr.f32.mxu0 0.0
  %370 = vmatmul.mubr.f32.gmra.mrb[0].mxu0 %v291
  %v371 = vpop.f32.mrb[0].mxu0
  %v372 = vadd.f32 0.0, %v371
  %v373 = vpop.f32.mrb[0].mxu0
  %374 = vmatprep.mubr.f32.mxu0 0.0
  %375 = vmatmul.mubr.f32.gmra.mrb[0].mxu0 %v294
  %v376 = vpop.f32.mrb[0].mxu0
  %v377 = vadd.f32 0.0, %v376
  %v378 = vpop.f32.mrb[0].mxu0
  %379 = vmatprep.mubr.f32.mxu0 0.0
  %380 = vmatmul.mubr.f32.gmra.mrb[0].mxu0 %v297
  %v381 = vpop.f32.mrb[0].mxu0
  %v382 = vadd.f32 0.0, %v381
  %v383 = vpop.f32.mrb[0].mxu0
  %384 = vmatprep.mubr.f32.mxu0 0.0
  %385 = vmatmul.mubr.f32.gmra.mrb[0].mxu0 %v300
  %v386 = vpop.f32.mrb[0].mxu0
  %v387 = vadd.f32 0.0, %v386
  %v388 = vpop.f32.mrb[0].mxu0
  %389 = vmatprep.mubr.f32.mxu0 0.0
  %390 = vmatmul.mubr.f32.gmra.mrb[0].mxu0 %v303
  %v391 = vpop.f32.mrb[0].mxu0
  %v392 = vadd.f32 0.0, %v391
  %v393 = vpop.f32.mrb[0].mxu0
  %394 = vdwg.mxu0
  %v395 = vadd.f32 %v253, %v372
  %v396 = vadd.f32 %v258, %v377
  %v397 = vadd.f32 %v263, %v382
  %v398 = vadd.f32 %v268, %v387
  %v399 = vadd.f32 %v273, %v392
  %v400 = vld [vmem:[%s2] sm:$0x1]
  %v402 = vlaneseq
  %v403 = vshrl.u32 %v402, 7
  %v404 = vsub.s32 0, %v403
  %v405 = vrot.slane %v400, %v404
  %v407 = vadd.f32 %v395, %v405
  %v408 = vadd.f32 %v396, %v405
  %v409 = vmax.f32 %v407, 0.0
  %v410 = vmax.f32 %v408, 0.0
  %411 = vst.msk [vmem:[#allocation3 + $0x1] sm:$0xff] %vm24, %v409
  %412 = vst.msk [vmem:[#allocation3 + $0x9] sm:$0xff] %vm24, %v410
  %v413 = vadd.f32 %v397, %v405
  %v414 = vadd.f32 %v398, %v405
  %v415 = vadd.f32 %v399, %v405
  %v416 = vmax.f32 %v413, 0.0
  %v417 = vmax.f32 %v414, 0.0
  %v418 = vmax.f32 %v415, 0.0
  %vm419 = vcmask 523266
  %420 = vst.msk [vmem:[#allocation3 + $0x11] sm:$0xfc] %vm419, %v416
  %421 = vst.msk [vmem:[#allocation3 + $0x19] sm:$0xff] %vm24, %v417
  %vm422 = vcmask 517120
  %423 = vst.msk [vmem:[#allocation3 + $0x21] sm:$0x3] %vm422, %v418
  %v424 = vld [vmem:[#allocation3] sm:$0xff]
  %v425 = vld [vmem:[#allocation3 + $0x8] sm:$0xff]
  %v426 = vld [vmem:[#allocation3 + $0x10] sm:$0xff]
  %v427 = vld [vmem:[#allocation3 + $0x18] sm:$0xff]
  %v428 = vld [vmem:[#allocation3 + $0x20] sm:$0x3]
  %v429 = vld [vmem:[%s3] sm:$0xff]
  %v430 = vld [vmem:[%s3 + $0x8] sm:$0xff]
  %v431 = vld [vmem:[%s3 + $0x10] sm:$0xff]
  %v432 = vld [vmem:[%s3 + $0x18] sm:$0xff]
  %v433 = vld [vmem:[%s3 + $0x20] sm:$0xff]
  %v434 = vld [vmem:[%s3 + $0x28] sm:$0xff]
  %v435 = vld [vmem:[%s3 + $0x30] sm:$0xff]
  %v436 = vld [vmem:[%s3 + $0x38] sm:$0xff]
  %v437 = vld [vmem:[#allocation3 + $0x1] sm:$0xff]
  %v438 = vld [vmem:[#allocation3 + $0x9] sm:$0xff]
  %v439 = vld [vmem:[#allocation3 + $0x11] sm:$0xff]
  %v440 = vld [vmem:[#allocation3 + $0x19] sm:$0xff]
  %v441 = vld [vmem:[#allocation3 + $0x21] sm:$0x3]
  %s442 = scalar_lea.vmem %s3, 64
  %v443 = vld [vmem:[%s442] sm:$0xff]
  %v444 = vld [vmem:[%s442 + $0x8] sm:$0xff]
  %v445 = vld [vmem:[%s442 + $0x10] sm:$0xff]
  %v446 = vld [vmem:[%s442 + $0x18] sm:$0xff]
  %v447 = vld [vmem:[%s442 + $0x20] sm:$0xff]
  %v448 = vld [vmem:[%s442 + $0x28] sm:$0xff]
  %v449 = vld [vmem:[%s442 + $0x30] sm:$0xff]
  %v450 = vld [vmem:[%s442 + $0x38] sm:$0xff]
  %v452 = vsel %vm24, %v437, 0
  %v455 = vsel %vm24, %v438, 0
  %v458 = vsel %vm24, %v439, 0
  %v461 = vsel %vm24, %v440, 0
  %v464 = vsel %vm24, %v441, 0
  %466 = vmatprep.subr.mxu0 0.0
  %467 = vmatpush1.msra.mxu0 %v443
  %468 = vmatprep.subr.mxu0 0.0
  %469 = vmatpush1.msra.mxu0 %v444
  %470 = vmatprep.subr.mxu0 0.0
  %471 = vmatpush1.msra.mxu0 %v445
  %472 = vmatprep.subr.mxu0 0.0
  %473 = vmatpush1.msra.mxu0 %v446
  %474 = vmatprep.subr.mxu0 0.0
  %475 = vmatpush1.msra.mxu0 %v447
  %476 = vmatprep.subr.mxu0 0.0
  %477 = vmatpush1.msra.mxu0 %v448
  %478 = vmatprep.subr.mxu0 0.0
  %479 = vmatpush1.msra.mxu0 %v449
  %480 = vmatprep.subr.mxu0 0.0
  %481 = vmatpush1.msra.mxu0 %v450
  %482 = vmatprep.subr.mxu0 0.0
  %483 = vmatpush1.msra.mxu0 0.0
  %484 = vmatprep.subr.mxu0 0.0
  %485 = vmatpush1.msra.mxu0 0.0
  %486 = vmatprep.subr.mxu0 0.0
  %487 = vmatpush1.msra.mxu0 0.0
  %488 = vmatprep.subr.mxu0 0.0
  %489 = vmatpush1.msra.mxu0 0.0
  %490 = vmatprep.subr.mxu0 0.0
  %491 = vmatpush1.msra.mxu0 0.0
  %492 = vmatprep.subr.mxu0 0.0
  %493 = vmatpush1.msra.mxu0 0.0
  %494 = vmatprep.subr.mxu0 0.0
  %495 = vmatpush1.msra.mxu0 0.0
  %496 = vmatprep.subr.mxu0 0.0
  %497 = vmatpush1.msra.mxu0 0.0
  %498 = vmatprep.subr.mxu0 0.0
  %499 = vmatpush1.msra.mxu0 0.0
  %500 = vmatprep.subr.mxu0 0.0
  %501 = vmatpush1.msra.mxu0 0.0
  %502 = vmatprep.subr.mxu0 0.0
  %503 = vmatpush1.msra.mxu0 0.0
  %504 = vmatprep.subr.mxu0 0.0
  %505 = vmatpush1.msra.mxu0 0.0
  %506 = vmatprep.subr.mxu0 0.0
  %507 = vmatpush1.msra.mxu0 0.0
  %508 = vmatprep.subr.mxu0 0.0
  %509 = vmatpush1.msra.mxu0 0.0
  %510 = vmatprep.subr.mxu0 0.0
  %511 = vmatpush1.msra.mxu0 0.0
  %512 = vmatprep.subr.mxu0 0.0
  %513 = vmatpush1.msra.mxu0 0.0
  %514 = vmatprep.subr.mxu0 0.0
  %515 = vmatpush1.msra.mxu0 0.0
  %516 = vmatprep.subr.mxu0 0.0
  %517 = vmatpush1.msra.mxu0 0.0
  %518 = vmatprep.subr.mxu0 0.0
  %519 = vmatpush1.msra.mxu0 0.0
  %520 = vmatprep.subr.mxu0 0.0
  %521 = vmatpush1.msra.mxu0 0.0
  %522 = vmatprep.subr.mxu0 0.0
  %523 = vmatpush1.msra.mxu0 0.0
  %524 = vmatprep.subr.mxu0 0.0
  %525 = vmatpush1.msra.mxu0 0.0
  %526 = vmatprep.subr.mxu0 0.0
  %527 = vmatpush1.msra.mxu0 0.0
  %528 = vmatprep.subr.mxu0 0.0
  %529 = vmatpush1.msra.mxu0 0.0
  %530 = vmatprep.mubr.f32.mxu0 0.0
  %531 = vmatmul.mubr.f32.gmra.mrb[0].mxu0 %v452
  %v532 = vpop.f32.mrb[0].mxu0
  %v533 = vadd.f32 0.0, %v532
  %v534 = vpop.f32.mrb[0].mxu0
  %535 = vmatprep.mubr.f32.mxu0 0.0
  %536 = vmatmul.mubr.f32.gmra.mrb[0].mxu0 %v455
  %v537 = vpop.f32.mrb[0].mxu0
  %v538 = vadd.f32 0.0, %v537
  %v539 = vpop.f32.mrb[0].mxu0
  %540 = vmatprep.mubr.f32.mxu0 0.0
  %541 = vmatmul.mubr.f32.gmra.mrb[0].mxu0 %v458
  %v542 = vpop.f32.mrb[0].mxu0
  %v543 = vadd.f32 0.0, %v542
  %v544 = vpop.f32.mrb[0].mxu0
  %545 = vmatprep.mubr.f32.mxu0 0.0
  %546 = vmatmul.mubr.f32.gmra.mrb[0].mxu0 %v461
  %v547 = vpop.f32.mrb[0].mxu0
  %v548 = vadd.f32 0.0, %v547
  %v549 = vpop.f32.mrb[0].mxu0
  %550 = vmatprep.mubr.f32.mxu0 0.0
  %551 = vmatmul.mubr.f32.gmra.mrb[0].mxu0 %v464
  %v552 = vpop.f32.mrb[0].mxu0
  %v553 = vadd.f32 0.0, %v552
  %v554 = vpop.f32.mrb[0].mxu0
  %555 = vdwg.mxu0
  %v557 = vsel %vm24, %v424, 0
  %v560 = vsel %vm24, %v425, 0
  %v563 = vsel %vm24, %v426, 0
  %v566 = vsel %vm24, %v427, 0
  %v569 = vsel %vm24, %v428, 0
  %571 = vmatprep.subr.mxu0 0.0
  %572 = vmatpush1.msra.mxu0 %v429
  %573 = vmatprep.subr.mxu0 0.0
  %574 = vmatpush1.msra.mxu0 %v430
  %575 = vmatprep.subr.mxu0 0.0
  %576 = vmatpush1.msra.mxu0 %v431
  %577 = vmatprep.subr.mxu0 0.0
  %578 = vmatpush1.msra.mxu0 %v432
  %579 = vmatprep.subr.mxu0 0.0
  %580 = vmatpush1.msra.mxu0 %v433
  %581 = vmatprep.subr.mxu0 0.0
  %582 = vmatpush1.msra.mxu0 %v434
  %583 = vmatprep.subr.mxu0 0.0
  %584 = vmatpush1.msra.mxu0 %v435
  %585 = vmatprep.subr.mxu0 0.0
  %586 = vmatpush1.msra.mxu0 %v436
  %587 = vmatprep.subr.mxu0 0.0
  %588 = vmatpush1.msra.mxu0 0.0
  %589 = vmatprep.subr.mxu0 0.0
  %590 = vmatpush1.msra.mxu0 0.0
  %591 = vmatprep.subr.mxu0 0.0
  %592 = vmatpush1.msra.mxu0 0.0
  %593 = vmatprep.subr.mxu0 0.0
  %594 = vmatpush1.msra.mxu0 0.0
  %595 = vmatprep.subr.mxu0 0.0
  %596 = vmatpush1.msra.mxu0 0.0
  %597 = vmatprep.subr.mxu0 0.0
  %598 = vmatpush1.msra.mxu0 0.0
  %599 = vmatprep.subr.mxu0 0.0
  %600 = vmatpush1.msra.mxu0 0.0
  %601 = vmatprep.subr.mxu0 0.0
  %602 = vmatpush1.msra.mxu0 0.0
  %603 = vmatprep.subr.mxu0 0.0
  %604 = vmatpush1.msra.mxu0 0.0
  %605 = vmatprep.subr.mxu0 0.0
  %606 = vmatpush1.msra.mxu0 0.0
  %607 = vmatprep.subr.mxu0 0.0
  %608 = vmatpush1.msra.mxu0 0.0
  %609 = vmatprep.subr.mxu0 0.0
  %610 = vmatpush1.msra.mxu0 0.0
  %611 = vmatprep.subr.mxu0 0.0
  %612 = vmatpush1.msra.mxu0 0.0
  %613 = vmatprep.subr.mxu0 0.0
  %614 = vmatpush1.msra.mxu0 0.0
  %615 = vmatprep.subr.mxu0 0.0
  %616 = vmatpush1.msra.mxu0 0.0
  %617 = vmatprep.subr.mxu0 0.0
  %618 = vmatpush1.msra.mxu0 0.0
  %619 = vmatprep.subr.mxu0 0.0
  %620 = vmatpush1.msra.mxu0 0.0
  %621 = vmatprep.subr.mxu0 0.0
  %622 = vmatpush1.msra.mxu0 0.0
  %623 = vmatprep.subr.mxu0 0.0
  %624 = vmatpush1.msra.mxu0 0.0
  %625 = vmatprep.subr.mxu0 0.0
  %626 = vmatpush1.msra.mxu0 0.0
  %627 = vmatprep.subr.mxu0 0.0
  %628 = vmatpush1.msra.mxu0 0.0
  %629 = vmatprep.subr.mxu0 0.0
  %630 = vmatpush1.msra.mxu0 0.0
  %631 = vmatprep.subr.mxu0 0.0
  %632 = vmatpush1.msra.mxu0 0.0
  %633 = vmatprep.subr.mxu0 0.0
  %634 = vmatpush1.msra.mxu0 0.0
  %635 = vmatprep.mubr.f32.mxu0 0.0
  %636 = vmatmul.mubr.f32.gmra.mrb[0].mxu0 %v557
  %v637 = vpop.f32.mrb[0].mxu0
  %v638 = vadd.f32 %v533, %v637
  %v639 = vpop.f32.mrb[0].mxu0
  %640 = vmatprep.mubr.f32.mxu0 0.0
  %641 = vmatmul.mubr.f32.gmra.mrb[0].mxu0 %v560
  %v642 = vpop.f32.mrb[0].mxu0
  %v643 = vadd.f32 %v538, %v642
  %v644 = vpop.f32.mrb[0].mxu0
  %645 = vmatprep.mubr.f32.mxu0 0.0
  %646 = vmatmul.mubr.f32.gmra.mrb[0].mxu0 %v563
  %v647 = vpop.f32.mrb[0].mxu0
  %v648 = vadd.f32 %v543, %v647
  %v649 = vpop.f32.mrb[0].mxu0
  %650 = vmatprep.mubr.f32.mxu0 0.0
  %651 = vmatmul.mubr.f32.gmra.mrb[0].mxu0 %v566
  %v652 = vpop.f32.mrb[0].mxu0
  %v653 = vadd.f32 %v548, %v652
  %v654 = vpop.f32.mrb[0].mxu0
  %655 = vmatprep.mubr.f32.mxu0 0.0
  %656 = vmatmul.mubr.f32.gmra.mrb[0].mxu0 %v569
  %v657 = vpop.f32.mrb[0].mxu0
  %v658 = vadd.f32 %v553, %v657
  %v659 = vpop.f32.mrb[0].mxu0
  %660 = vdwg.mxu0
  %v661 = vld [vmem:[#allocation3 + $0x2] sm:$0xff]
  %v662 = vld [vmem:[#allocation3 + $0xa] sm:$0xff]
  %v663 = vld [vmem:[#allocation3 + $0x12] sm:$0xff]
  %v664 = vld [vmem:[#allocation3 + $0x1a] sm:$0xff]
  %v665 = vld [vmem:[#allocation3 + $0x22] sm:$0x3]
  %s666 = scalar_lea.vmem %s3, 128
  %v667 = vld [vmem:[%s666] sm:$0xff]
  %v668 = vld [vmem:[%s666 + $0x8] sm:$0xff]
  %v669 = vld [vmem:[%s666 + $0x10] sm:$0xff]
  %v670 = vld [vmem:[%s666 + $0x18] sm:$0xff]
  %v671 = vld [vmem:[%s666 + $0x20] sm:$0xff]
  %v672 = vld [vmem:[%s666 + $0x28] sm:$0xff]
  %v673 = vld [vmem:[%s666 + $0x30] sm:$0xff]
  %v674 = vld [vmem:[%s666 + $0x38] sm:$0xff]
  %v676 = vsel %vm24, %v661, 0
  %v679 = vsel %vm24, %v662, 0
  %v682 = vsel %vm24, %v663, 0
  %v685 = vsel %vm24, %v664, 0
  %v688 = vsel %vm24, %v665, 0
  %690 = vmatprep.subr.mxu0 0.0
  %691 = vmatpush1.msra.mxu0 %v667
  %692 = vmatprep.subr.mxu0 0.0
  %693 = vmatpush1.msra.mxu0 %v668
  %694 = vmatprep.subr.mxu0 0.0
  %695 = vmatpush1.msra.mxu0 %v669
  %696 = vmatprep.subr.mxu0 0.0
  %697 = vmatpush1.msra.mxu0 %v670
  %698 = vmatprep.subr.mxu0 0.0
  %699 = vmatpush1.msra.mxu0 %v671
  %700 = vmatprep.subr.mxu0 0.0
  %701 = vmatpush1.msra.mxu0 %v672
  %702 = vmatprep.subr.mxu0 0.0
  %703 = vmatpush1.msra.mxu0 %v673
  %704 = vmatprep.subr.mxu0 0.0
  %705 = vmatpush1.msra.mxu0 %v674
  %706 = vmatprep.subr.mxu0 0.0
  %707 = vmatpush1.msra.mxu0 0.0
  %708 = vmatprep.subr.mxu0 0.0
  %709 = vmatpush1.msra.mxu0 0.0
  %710 = vmatprep.subr.mxu0 0.0
  %711 = vmatpush1.msra.mxu0 0.0
  %712 = vmatprep.subr.mxu0 0.0
  %713 = vmatpush1.msra.mxu0 0.0
  %714 = vmatprep.subr.mxu0 0.0
  %715 = vmatpush1.msra.mxu0 0.0
  %716 = vmatprep.subr.mxu0 0.0
  %717 = vmatpush1.msra.mxu0 0.0
  %718 = vmatprep.subr.mxu0 0.0
  %719 = vmatpush1.msra.mxu0 0.0
  %720 = vmatprep.subr.mxu0 0.0
  %721 = vmatpush1.msra.mxu0 0.0
  %722 = vmatprep.subr.mxu0 0.0
  %723 = vmatpush1.msra.mxu0 0.0
  %724 = vmatprep.subr.mxu0 0.0
  %725 = vmatpush1.msra.mxu0 0.0
  %726 = vmatprep.subr.mxu0 0.0
  %727 = vmatpush1.msra.mxu0 0.0
  %728 = vmatprep.subr.mxu0 0.0
  %729 = vmatpush1.msra.mxu0 0.0
  %730 = vmatprep.subr.mxu0 0.0
  %731 = vmatpush1.msra.mxu0 0.0
  %732 = vmatprep.subr.mxu0 0.0
  %733 = vmatpush1.msra.mxu0 0.0
  %734 = vmatprep.subr.mxu0 0.0
  %735 = vmatpush1.msra.mxu0 0.0
  %736 = vmatprep.subr.mxu0 0.0
  %737 = vmatpush1.msra.mxu0 0.0
  %738 = vmatprep.subr.mxu0 0.0
  %739 = vmatpush1.msra.mxu0 0.0
  %740 = vmatprep.subr.mxu0 0.0
  %741 = vmatpush1.msra.mxu0 0.0
  %742 = vmatprep.subr.mxu0 0.0
  %743 = vmatpush1.msra.mxu0 0.0
  %744 = vmatprep.subr.mxu0 0.0
  %745 = vmatpush1.msra.mxu0 0.0
  %746 = vmatprep.subr.mxu0 0.0
  %747 = vmatpush1.msra.mxu0 0.0
  %748 = vmatprep.subr.mxu0 0.0
  %749 = vmatpush1.msra.mxu0 0.0
  %750 = vmatprep.subr.mxu0 0.0
  %751 = vmatpush1.msra.mxu0 0.0
  %752 = vmatprep.subr.mxu0 0.0
  %753 = vmatpush1.msra.mxu0 0.0
  %754 = vmatprep.mubr.f32.mxu0 0.0
  %755 = vmatmul.mubr.f32.gmra.mrb[0].mxu0 %v676
  %v756 = vpop.f32.mrb[0].mxu0
  %v757 = vadd.f32 0.0, %v756
  %v758 = vpop.f32.mrb[0].mxu0
  %759 = vmatprep.mubr.f32.mxu0 0.0
  %760 = vmatmul.mubr.f32.gmra.mrb[0].mxu0 %v679
  %v761 = vpop.f32.mrb[0].mxu0
  %v762 = vadd.f32 0.0, %v761
  %v763 = vpop.f32.mrb[0].mxu0
  %764 = vmatprep.mubr.f32.mxu0 0.0
  %765 = vmatmul.mubr.f32.gmra.mrb[0].mxu0 %v682
  %v766 = vpop.f32.mrb[0].mxu0
  %v767 = vadd.f32 0.0, %v766
  %v768 = vpop.f32.mrb[0].mxu0
  %769 = vmatprep.mubr.f32.mxu0 0.0
  %770 = vmatmul.mubr.f32.gmra.mrb[0].mxu0 %v685
  %v771 = vpop.f32.mrb[0].mxu0
  %v772 = vadd.f32 0.0, %v771
  %v773 = vpop.f32.mrb[0].mxu0
  %774 = vmatprep.mubr.f32.mxu0 0.0
  %775 = vmatmul.mubr.f32.gmra.mrb[0].mxu0 %v688
  %v776 = vpop.f32.mrb[0].mxu0
  %v777 = vadd.f32 0.0, %v776
  %v778 = vpop.f32.mrb[0].mxu0
  %779 = vdwg.mxu0
  %v780 = vadd.f32 %v638, %v757
  %v781 = vadd.f32 %v643, %v762
  %v782 = vadd.f32 %v648, %v767
  %v783 = vadd.f32 %v653, %v772
  %v784 = vadd.f32 %v658, %v777
  %v785 = vld [vmem:[%s4] sm:$0x1]
  %v787 = vlaneseq
  %v788 = vshrl.u32 %v787, 7
  %v789 = vsub.s32 0, %v788
  %v790 = vrot.slane %v785, %v789
  %v792 = vadd.f32 %v780, %v790
  %v793 = vadd.f32 %v781, %v790
  %v794 = vld [vmem:[%s0] sm:$0xff]
  %v795 = vld [vmem:[%s0 + $0x8] sm:$0xff]
  %v796 = vadd.f32 %v792, %v794
  %v797 = vadd.f32 %v793, %v795
  %v798 = vmax.f32 %v796, 0.0
  %v799 = vmax.f32 %v797, 0.0
  %800 = vst.msk [vmem:[%s5] sm:$0xff] %vm24, %v798
  %801 = vst.msk [vmem:[%s5 + $0x8] sm:$0xff] %vm24, %v799
  %v802 = vadd.f32 %v782, %v790
  %v803 = vadd.f32 %v783, %v790
  %v804 = vadd.f32 %v784, %v790
  %v805 = vld [vmem:[%s31] sm:$0xff]
  %v806 = vld [vmem:[%s31 + $0x8] sm:$0xff]
  %vm809 = vcmask 1041408
  %v810 = vrot.slane %v805, 6
  %v811 = vrot.slane %v806, 6
  %v812 = vsel %vm809, %v810, %v811
  %v816 = vadd.f32 %v802, %v810
  %v817 = vadd.f32 %v803, %v812
  %v818 = vadd.f32 %v804, %v811
  %v819 = vmax.f32 %v816, 0.0
  %v820 = vmax.f32 %v817, 0.0
  %v821 = vmax.f32 %v818, 0.0
  %s822 = scalar_lea.vmem %s5, 16
  %823 = vst.msk [vmem:[%s822 - $0x2] sm:$0xfc] %vm419, %v819
  %824 = vst.msk [vmem:[%s822 + $0x6] sm:$0xff] %vm24, %v820
  %825 = vst.msk [vmem:[%s822 + $0xe] sm:$0x3] %vm422, %v821
  // Predicated region
  $region22: #{residual_block_forward.1} parent=0 // pred_check
    _
  $region23: #{residual_block_forward.1} parent=0 // pred_check_branch
    %827 = sbr.rel (0) target = $region25
  $region24: #{residual_block_forward.1} parent=0 // pred_region
    _
  $region25: #{residual_block_forward.1} parent=0 // pred_fallthru
    _
  // Predicated region
  $region26: #{residual_block_forward.1} parent=0 // pred_check
    _
  $region27: #{residual_block_forward.1} parent=0 // pred_check_branch
    %829 = sbr.rel (0) target = $region29
  $region28: #{residual_block_forward.1} parent=0 // pred_region
    _
  $region29: #{residual_block_forward.1} parent=0 // pred_fallthru
    _

</llo_original>
